<compile_context>
chip_gen: v7x
topology: tpu7x:2x2x1
jax: 0.10.0
libtpu: 0.0.40
codegen_flags: <defaults>
</compile_context>

<pallas_src>
import jax
import jax.numpy as jnp
from jax.experimental import pallas as pl
from jax.experimental.pallas import tpu as pltpu


def _energy_max_norm_kernel(x_ref, o_ref):
    # x_ref / o_ref: (R_TILE, L) blocks. L is complete, so the lane reduce is
    # exactly AdaptiveMaxPool1d(1); the subtract is a VPU broadcast op.
    x = x_ref[...]
    o_ref[...] = jnp.max(x, axis=-1, keepdims=True) - x


def _pick_row_tile(num_rows, L, itemsize, target_bytes=2 * 1024 * 1024):
    """Row-tile: multiple of the sublane pack factor, ~target_bytes per block."""
    pack = max(8, 32 // itemsize)          # 8 (f32), 16 (bf16), 32 (int8/fp8)
    rows = (target_bytes // max(1, L * itemsize)) // pack * pack
    rows = max(pack, rows)
    if rows >= num_rows:
        return num_rows                    # full extent is always a legal block
    return rows


def energy_max_norm(x):
    """x: (N, C, L) -> (N, C, L), out = max(x, axis=-1, keepdims=True) - x."""
    N, C, L = x.shape
    R = N * C
    x2 = x.reshape(R, L)                   # contiguous reshape, no data movement

    itemsize = jnp.dtype(x.dtype).itemsize
    r_tile = _pick_row_tile(R, L, itemsize)

    out2 = pl.pallas_call(
        _energy_max_norm_kernel,
        out_shape=jax.ShapeDtypeStruct((R, L), x.dtype),
        grid_spec=pl.GridSpec(
            grid=(pl.cdiv(R, r_tile),),
            in_specs=[pl.BlockSpec((r_tile, L), lambda i: (i, 0))],
            out_specs=pl.BlockSpec((r_tile, L), lambda i: (i, 0)),
        ),
        compiler_params=pltpu.CompilerParams(
            dimension_semantics=("parallel",),        # shard rows across TCs (v7x)
            vmem_limit_bytes=32 * 1024 * 1024,        # safe on v5e/v6e/v7x
        ),
    )(x2)

    return out2.reshape(N, C, L)


if __name__ == "__main__":
    key = jax.random.PRNGKey(0)
    N, C, L = 2, 4, 16                     # small (N, C, L) shapes for the test
    x = jax.random.normal(key, (N, C, L), dtype=jnp.float32)

    out = energy_max_norm(x)
    out = jax.block_until_ready(out)

    # reference check in plain JAX
    ref = jnp.max(x, axis=-1, keepdims=True) - x
    assert out.shape == x.shape
    assert jnp.allclose(out, ref, atol=1e-6), "mismatch vs reference"

    print("KERNEL_OK")
</pallas_src>

<mosaic_0001>
module attributes {stable_mosaic.version = 11 : i64} {
  func.func @_energy_max_norm_kernel(%arg0: i32, %arg1: memref<8x16xf32, #tpu.memory_space<vmem>>, %arg2: memref<8x16xf32, #tpu.memory_space<vmem>>) attributes {dimension_semantics = [#tpu.dimension_semantics<parallel>], iteration_bounds = array<i64: 1>, scalar_prefetch = 0 : i64, scratch_operands = 0 : i64, tpu.core_type = #tpu.core_type<tc>, window_params = [{transform_indices = @transform_0, window_bounds = array<i64: 8, 16>}, {transform_indices = @transform_1, window_bounds = array<i64: 8, 16>}]} {
    %c0 = arith.constant 0 : index
    %c0_0 = arith.constant 0 : index
    %0 = vector.load %arg1[%c0, %c0_0] : memref<8x16xf32, #tpu.memory_space<vmem>>, vector<8x16xf32>
    %cst = arith.constant dense<0xFF800000> : vector<8xf32>
    %1 = vector.multi_reduction <maximumf>, %0, %cst [1] : vector<8x16xf32> to vector<8xf32>
    %2 = vector.shape_cast %1 : vector<8xf32> to vector<8x1xf32>
    %3 = vector.broadcast %2 : vector<8x1xf32> to vector<8x16xf32>
    %4 = arith.subf %3, %0 : vector<8x16xf32>
    %c0_1 = arith.constant 0 : index
    %c0_2 = arith.constant 0 : index
    %5 = vector.load %arg2[%c0_1, %c0_2] : memref<8x16xf32, #tpu.memory_space<vmem>>, vector<8x16xf32>
    tpu.vector_store %arg2[%c0_1, %c0_2], %4 {strides = array<i32>} : memref<8x16xf32, #tpu.memory_space<vmem>>, vector<8x16xf32>,
    return
  }
  func.func @transform_0(%arg0: i32) -> (i32, i32) {
    %c0_i32 = arith.constant 0 : i32
    %c0_i32_0 = arith.constant 0 : i32
    return %arg0, %c0_i32 : i32, i32
  }
  func.func @transform_1(%arg0: i32) -> (i32, i32) {
    %c0_i32 = arith.constant 0 : i32
    %c0_i32_0 = arith.constant 0 : i32
    return %arg0, %c0_i32 : i32, i32
  }
}

</mosaic_0001>

<llo_original>
// kernel: tpu_custom_call.1
$region0: #{tpu_custom_call.1}
  #allocation0 [shape = 'u32[]', space=smem, size = 0x4, offset = 0x4, fixed_abs, tag = 'smem constant byte address 0x4 - core index']
  #allocation1 [shape = 'u32[144,128]{1,0:T(1,128)}', space=vmem, size = 0x12000, scoped, tag = 'internal scratch']
  %s0 = inlined_call_operand.hbm [shape: f32[8,16], index: 0, kind: input, shape index: {}]
  %s1 = inlined_call_operand.hbm [shape: f32[8,16], index: 1, kind: output, shape index: {}]
  %s2 = sld [smem:[#allocation0]]
  $region18: #{tpu_custom_call.1} parent=0
    _
  %s4 = ssub.s32 1, %s2
  %s5 = scalar_select 0, %s4, %s2
  $region1: #{tpu_custom_call.1} parent=0
    #allocation2 [shape = 'u8[4096]{0}', space=vmem, size = 0x1000, scoped, tag = 'input window, operand 0, single buffered']
    #allocation3 [shape = 's32[1]{0}', space=sflag, size = 0x4, scoped, tag = 'scoped memory for tpu_custom_call.1']
    #allocation4 [shape = 's32[1]{0}', space=sflag, size = 0x4, scoped, tag = 'scoped memory for tpu_custom_call.1']
    #allocation5 [shape = 'u8[4096]{0}', space=vmem, size = 0x1000, scoped, tag = 'output window, operand 0, single buffered']
    %6 = vsyncpa [#allocation3], 0
    %7 = vsyncpa [#allocation4], 0
    // Predicated region
    $region2: #{tpu_custom_call.1} parent=1 // pred_check
      _
    $region3: #{tpu_custom_call.1} parent=1 // pred_check_branch
      %9 = sbr.rel (0) target = $region5
    $region4: #{tpu_custom_call.1} parent=1 // pred_region
      %s11 = ssub.s32 128, 128
      %12 = vsyncadd [#allocation3], %s11
      %s14 = sshll.u32 [#allocation2], 4
      %s15 = int_to_ptr.vmem [resolvable:$true] %s14
      %17 = dma.hbm_to_vmem [thread:$0]  %s0, 128, %s15, [#allocation3]
    $region5: #{tpu_custom_call.1} parent=1 // pred_fallthru
      _
    // Predicated region
    $region6: #{tpu_custom_call.1} parent=1 // pred_check
      _
    $region7: #{tpu_custom_call.1} parent=1 // pred_check_branch
      %19 = sbr.rel (0) target = $region9
    $region8: #{tpu_custom_call.1} parent=1 // pred_region
      %20 = dma.done [#allocation3], 128
    $region9: #{tpu_custom_call.1} parent=1 // pred_fallthru
      _
    %v21 = vld [vmem:[#allocation2] sm:$0xff]
    %vm22 = vcmask 130048
    %v23 = vsel %vm22, %v21, -inf
    %24 = vmax.xlane.f32.xlu0 %v23
    %v25 = vpop.xlane.xlu0 %24
    %v26 = vsub.f32 %v25, %v21
    %27 = vst.msk [vmem:[#allocation5] sm:$0xff] %vm22, %v26
    // Predicated region
    $region10: #{tpu_custom_call.1} parent=1 // pred_check
      _
    $region11: #{tpu_custom_call.1} parent=1 // pred_check_branch
      %29 = sbr.rel (0) target = $region13
    $region12: #{tpu_custom_call.1} parent=1 // pred_region
      %s31 = ssub.s32 128, 128
      %32 = vsyncadd [#allocation4], %s31
      %s34 = sshll.u32 [#allocation5], 4
      %s35 = int_to_ptr.vmem [resolvable:$true] %s34
      %37 = dma.vmem_to_hbm [thread:$0]  %s35, 128, %s1, [#allocation4]
    $region13: #{tpu_custom_call.1} parent=1 // pred_fallthru
      _
    // Predicated region
    $region14: #{tpu_custom_call.1} parent=1 // pred_check
      _
    $region15: #{tpu_custom_call.1} parent=1 // pred_check_branch
      %39 = sbr.rel (0) target = $region17
    $region16: #{tpu_custom_call.1} parent=1 // pred_region
      %40 = dma.done [#allocation4], 128
    $region17: #{tpu_custom_call.1} parent=1 // pred_fallthru
      _
    %41 = vsyncpa [#allocation3], 1
    %42 = vsyncpa [#allocation4], 1

</llo_original>
